<compile_context>
chip_gen: v6e
topology: v6e:2x2x1
jax: 0.10.0
libtpu: 0.0.40
codegen_flags: <defaults>
</compile_context>

<pallas_src>
import functools

import numpy as np
import jax
import jax.numpy as jnp
from jax.experimental import pallas as pl
from jax.experimental.pallas import tpu as pltpu


def _round_up(x, m):
    return ((x + m - 1) // m) * m


# ---------------------------------------------------------------------------
# Pass 1: scaled inverse-sqrt degrees
#   d_scaled[i] = sqrt(2 / lambda_max) / sqrt(max(sum_j A[i, j], 1))
# so that d_scaled * A * d_scaled^T == (2/lambda_max) * D^-1/2 A D^-1/2.
# ---------------------------------------------------------------------------
def _degree_kernel(adj_ref, d_ref, *, c_scale):
    j = pl.program_id(1)

    @pl.when(j == 0)
    def _():
        d_ref[...] = jnp.zeros_like(d_ref)

    d_ref[...] += jnp.sum(adj_ref[...].astype(jnp.float32), axis=1,
                          keepdims=True)

    @pl.when(j == pl.num_programs(1) - 1)
    def _():
        d_ref[...] = c_scale * jax.lax.rsqrt(jnp.maximum(d_ref[...], 1.0))


# ---------------------------------------------------------------------------
# Pass 2: Chebyshev recurrence + weight projection.
#
# Grid = (K-1, row_tiles, src_tiles).  Step t produces X_{t+1}:
#   X_0 = feat
#   X_1 = c1 * X_0 - Y                    (Y = A_hat_scaled @ X_0)
#   X_{t+1} = 2 * (c1 * X_t - Y) - X_{t-1}
# and the output accumulates  bias + sum_i X_i @ W_i  into a VMEM-resident
# (N_pad, Dout_pad) block (index map constant -> single HBM writeback).
# ---------------------------------------------------------------------------
def _cheb_kernel(adj_ref, feat_ref, d_ref, w_ref, b_ref, o_ref, xbuf, acc_y,
                 *, c1, mm_dtype):
    t = pl.program_id(0)            # this step produces X_{t+1}
    m = pl.program_id(1)            # destination-row tile
    s = pl.program_id(2)            # source-column tile
    n_s = pl.num_programs(2)

    tile = adj_ref.shape[0]
    n_pad = xbuf.shape[0] // 2
    din = feat_ref.shape[1]

    cur = t % 2                     # xbuf slot holding X_t
    oth = 1 - cur                   # slot holding X_{t-1}; receives X_{t+1}

    m_rows = pl.ds(pl.multiple_of(m * tile, tile), tile)
    s_rows = pl.ds(pl.multiple_of(s * tile, tile), tile)

    # Very first grid step: seed slot 0 with X_0 = feat, zero slot 1 (X_{-1}).
    @pl.when((t == 0) & (m == 0) & (s == 0))
    def _():
        xbuf[:n_pad, :] = feat_ref[...]
        xbuf[n_pad:, :] = jnp.zeros((n_pad, din), jnp.float32)

    @pl.when(s == 0)
    def _():
        acc_y[...] = jnp.zeros_like(acc_y)

    # acc_y += A[m, s] @ (d[s] * X_t[s]).  Raw adjacency streamed from HBM in
    # mm_dtype (bf16 is exact for 0/1 entries); D^-1/2 and 2/lambda_max are
    # folded into the small (tile, Din) operand -> no N^2 elementwise pass and
    # no eye / L / L_hat ever materialized.
    x_t_src = xbuf[pl.ds(pl.multiple_of(cur * n_pad + s * tile, tile), tile), :]
    rhs = (d_ref[s_rows, :] * x_t_src).astype(mm_dtype)
    acc_y[...] += jnp.dot(adj_ref[...], rhs,
                          preferred_element_type=jnp.float32)

    # Last source tile: finish Y, apply the recurrence for this row tile and
    # accumulate its projection (f32) into the resident output block.
    @pl.when(s == n_s - 1)
    def _():
        y = d_ref[m_rows, :] * acc_y[...]               # (A_hat_scaled @ X_t)[m]
        x_t_m = xbuf[pl.ds(pl.multiple_of(cur * n_pad + m * tile, tile),
                           tile), :]
        prev_idx = pl.ds(pl.multiple_of(oth * n_pad + m * tile, tile), tile)

        base = c1 * x_t_m - y                           # (L_hat @ X_t)[m]
        coef = jnp.where(t == 0, 1.0, 2.0)              # X_1=base; else 2*base-X_{t-1}
        x_new = coef * base - xbuf[prev_idx, :]
        xbuf[prev_idx, :] = x_new                       # store X_{t+1}[m]

        @pl.when(t == 0)
        def _():
            # First order: initialize with bias + X_0 @ W_0.
            o_ref[m_rows, :] = b_ref[...] + jnp.dot(
                x_t_m, w_ref[:din, :], preferred_element_type=jnp.float32)

        w_t = w_ref[pl.ds(pl.multiple_of((t + 1) * din, din), din), :]
        o_ref[m_rows, :] += jnp.dot(x_new, w_t,
                                    preferred_element_type=jnp.float32)


# ---------------------------------------------------------------------------
# Wrapper
# ---------------------------------------------------------------------------
def dense_cheb_conv(feat, adj, W, bias, lambda_max, *, tile=None,
                    matmul_dtype=jnp.float32):
    """Forward pass of DenseChebConv.

    feat: (N, Din), adj: (N, N) (rows = destination, cols = source),
    W: (K, Din, Dout), bias: (Dout,), lambda_max: python float.
    Returns (N, Dout) float32.
    """
    N, Din = feat.shape
    K, _, Dout = W.shape
    W = W.astype(jnp.float32)
    if K == 1:
        # Pad one zero-weight order so the recurrence grid is non-empty; the
        # extra order contributes nothing.
        W = jnp.concatenate([W, jnp.zeros((1, Din, Dout), jnp.float32)], 0)
    K_eff = W.shape[0]

    N_pad = _round_up(N, 128)
    if tile is None:
        tile = 128
        for cand in (512, 256):
            if N_pad % cand == 0:
                tile = cand
                break
    assert N_pad % tile == 0 and tile % 128 == 0
    n_tiles = N_pad // tile
    Din_p = _round_up(Din, 8)        # sublane-aligned dynamic W slices
    Dout_p = _round_up(Dout, 128)    # lane-dense output stores / full vregs

    mm_dtype = jnp.dtype(matmul_dtype)
    adj_p = jnp.zeros((N_pad, N_pad), mm_dtype).at[:N, :N].set(
        adj.astype(mm_dtype))
    feat_p = jnp.zeros((N_pad, Din_p), jnp.float32).at[:N, :Din].set(
        feat.astype(jnp.float32))
    w_p = jnp.zeros((K_eff, Din_p, Dout_p), jnp.float32).at[
        :, :Din, :Dout].set(W)
    w_flat = w_p.reshape(K_eff * Din_p, Dout_p)
    b_p = jnp.zeros((1, Dout_p), jnp.float32).at[0, :Dout].set(
        bias.astype(jnp.float32))

    lam = float(lambda_max)
    c_scale = float(np.sqrt(2.0 / lam))   # folded into d -> A_hat carries 2/lmax
    c1 = float(2.0 / lam - 1.0)           # L_hat = c1 * I - A_hat_scaled

    # ---- pass 1: scaled degrees -------------------------------------------
    d_scaled = pl.pallas_call(
        functools.partial(_degree_kernel, c_scale=c_scale),
        out_shape=jax.ShapeDtypeStruct((N_pad, 1), jnp.float32),
        grid=(n_tiles, n_tiles),
        in_specs=[pl.BlockSpec((tile, tile), lambda i, j: (i, j))],
        out_specs=pl.BlockSpec((tile, 1), lambda i, j: (i, 0)),
        compiler_params=pltpu.CompilerParams(
            dimension_semantics=("arbitrary", "arbitrary")),
    )(adj_p)

    # ---- pass 2: recurrence + projection ----------------------------------
    adj_bytes = mm_dtype.itemsize
    flops = (2 * (K_eff - 1) * N_pad * N_pad * Din_p
             + 2 * K_eff * N_pad * Din_p * Dout_p)
    bytes_accessed = ((K_eff - 1) * N_pad * N_pad * adj_bytes
                      + N_pad * Din_p * 4 + N_pad * Dout_p * 4
                      + K_eff * Din_p * Dout_p * 4)

    lane_pad = lambda d: _round_up(d, 128)
    vmem_est = (2 * tile * tile * adj_bytes            # double-buffered adj tile
                + N_pad * lane_pad(Din_p) * 4          # resident feat
                + N_pad * 128 * 4                      # resident d_scaled
                + K_eff * Din_p * Dout_p * 4
                + 8 * Dout_p * 4
                + N_pad * Dout_p * 4                   # resident output block
                + 2 * N_pad * lane_pad(Din_p) * 4      # X ping-pong scratch
                + tile * lane_pad(Din_p) * 4)          # Y accumulator
    vmem_limit = int(min(max(2 * vmem_est, 16 * 2**20), 64 * 2**20))

    out_p = pl.pallas_call(
        functools.partial(_cheb_kernel, c1=c1, mm_dtype=mm_dtype),
        out_shape=jax.ShapeDtypeStruct((N_pad, Dout_p), jnp.float32),
        grid=(K_eff - 1, n_tiles, n_tiles),
        in_specs=[
            pl.BlockSpec((tile, tile), lambda t, m, s: (m, s)),      # adj (streamed)
            pl.BlockSpec((N_pad, Din_p), lambda t, m, s: (0, 0)),    # feat (resident)
            pl.BlockSpec((N_pad, 1), lambda t, m, s: (0, 0)),        # d_scaled
            pl.BlockSpec((K_eff * Din_p, Dout_p),
                         lambda t, m, s: (0, 0)),                    # W (flat, resident)
            pl.BlockSpec((1, Dout_p), lambda t, m, s: (0, 0)),       # bias
        ],
        out_specs=pl.BlockSpec((N_pad, Dout_p), lambda t, m, s: (0, 0)),
        scratch_shapes=[
            pltpu.VMEM((2 * N_pad, Din_p), jnp.float32),   # X_t / X_{t±1}
            pltpu.VMEM((tile, Din_p), jnp.float32),        # Y accumulator
        ],
        compiler_params=pltpu.CompilerParams(
            # TODO(synk): the order/row axes share the X scratch so they must
            # stay sequential; v7x dual-TC row parallelism would need the X
            # buffers in VMEM_SHARED.
            dimension_semantics=("arbitrary", "arbitrary", "arbitrary"),
            vmem_limit_bytes=vmem_limit),
        cost_estimate=pl.CostEstimate(flops=flops, transcendentals=0,
                                      bytes_accessed=bytes_accessed),
    )(adj_p, feat_p, d_scaled, w_flat, b_p)

    return out_p[:N, :Dout]


# ---------------------------------------------------------------------------
# Host-side lambda_max + pure-JAX reference (verification only)
# ---------------------------------------------------------------------------
def _lambda_max_host(adj_np):
    """torch.linalg.eigvals(L).real.max() equivalent, on host with numpy."""
    n = adj_np.shape[0]
    deg = adj_np.sum(axis=1)
    d_invsqrt = 1.0 / np.sqrt(np.maximum(deg, 1.0))
    lap = np.eye(n) - d_invsqrt[:, None] * adj_np * d_invsqrt[None, :]
    return float(np.linalg.eigvals(lap).real.max())


def _reference_jax(feat, adj, W, bias, lambda_max):
    """Direct transcription of the PyTorch forward."""
    A = adj.astype(jnp.float32)
    n = A.shape[0]
    d_invsqrt = 1.0 / jnp.sqrt(jnp.maximum(A.sum(axis=1), 1.0))
    D_invsqrt = jnp.diag(d_invsqrt)
    I = jnp.eye(n, dtype=jnp.float32)
    L = I - D_invsqrt @ A @ D_invsqrt
    L_hat = 2.0 * L / lambda_max - I
    K = W.shape[0]
    Z = [I]
    if K > 1:
        Z.append(L_hat)
    for _ in range(2, K):
        Z.append(2.0 * L_hat @ Z[-1] - Z[-2])
    Zs = jnp.stack(Z, 0)
    Zh = Zs @ feat[None] @ W
    return Zh.sum(0) + bias


if __name__ == "__main__":
    N, Din, Dout, K = 200, 32, 16, 3   # N=200 -> padded to 256 (2x2 row/src tiles)

    key = jax.random.PRNGKey(0)
    k_adj, k_feat, k_w = jax.random.split(key, 3)

    # Random sparse-ish binary adjacency (rows = destination, cols = source).
    adj = (jax.random.uniform(k_adj, (N, N)) < 0.25).astype(jnp.float32)
    feat = jax.random.normal(k_feat, (N, Din), dtype=jnp.float32)

    # Parameters: xavier_normal_ with gain('relu') = sqrt(2), zero bias.
    gain = np.sqrt(2.0)
    std = gain * np.sqrt(2.0 / (Din + Dout))
    W = jax.random.normal(k_w, (K, Din, Dout), dtype=jnp.float32) * std
    bias = jnp.zeros((Dout,), dtype=jnp.float32)

    # TODO(synk): torch.linalg.eigvals (nonsymmetric eig) has no Pallas/TPU
    # lowering; lambda_max is computed on host with numpy, as the module also
    # allows passing lambda_max explicitly.
    lambda_max = _lambda_max_host(np.asarray(adj, dtype=np.float64))

    ref = _reference_jax(feat, adj, W, bias, lambda_max)

    # f32 adjacency chain: exact path, tight tolerance.
    out_f32 = jax.block_until_ready(
        dense_cheb_conv(feat, adj, W, bias, lambda_max, tile=128,
                        matmul_dtype=jnp.float32))
    np.testing.assert_allclose(np.asarray(out_f32), np.asarray(ref),
                               rtol=5e-4, atol=5e-4)

    # bf16 adjacency chain (MXU-native on v6e/v7x), f32 accumulation: looser.
    out_bf16 = jax.block_until_ready(
        dense_cheb_conv(feat, adj, W, bias, lambda_max, tile=128,
                        matmul_dtype=jnp.bfloat16))
    np.testing.assert_allclose(np.asarray(out_bf16), np.asarray(ref),
                               rtol=5e-2, atol=5e-2)

    print("KERNEL_OK")
</pallas_src>

<mosaic_0001>
module attributes {stable_mosaic.version = 11 : i64} {
  func.func @_degree_kernel(%arg0: i32, %arg1: i32, %arg2: memref<128x128xf32, #tpu.memory_space<vmem>>, %arg3: memref<128x1xf32, #tpu.memory_space<vmem>>) attributes {dimension_semantics = [#tpu.dimension_semantics<arbitrary>, #tpu.dimension_semantics<arbitrary>], iteration_bounds = array<i64: 2, 2>, scalar_prefetch = 0 : i64, scratch_operands = 0 : i64, tpu.core_type = #tpu.core_type<tc>, window_params = [{transform_indices = @transform_0, window_bounds = array<i64: 128, 128>}, {transform_indices = @transform_1, window_bounds = array<i64: 128, 1>}]} {
    %c0_i32 = arith.constant 0 : i32
    %0 = arith.cmpi eq, %arg1, %c0_i32 : i32
    %1 = arith.extui %0 : i1 to i32
    %c0_i32_0 = arith.constant 0 : i32
    %2 = arith.cmpi ne, %1, %c0_i32_0 : i32
    scf.if %2 {
      %cst_7 = arith.constant 0.000000e+00 : f32
      %12 = vector.broadcast %cst_7 : f32 to vector<128x1xf32>
      %c0_8 = arith.constant 0 : index
      %c0_9 = arith.constant 0 : index
      %13 = vector.load %arg3[%c0_8, %c0_9] : memref<128x1xf32, #tpu.memory_space<vmem>>, vector<128x1xf32>
      tpu.vector_store %arg3[%c0_8, %c0_9], %12 {strides = array<i32>} : memref<128x1xf32, #tpu.memory_space<vmem>>, vector<128x1xf32>,
    } else {
    }
    %c0 = arith.constant 0 : index
    %c0_1 = arith.constant 0 : index
    %3 = vector.load %arg3[%c0, %c0_1] : memref<128x1xf32, #tpu.memory_space<vmem>>, vector<128x1xf32>
    %c0_2 = arith.constant 0 : index
    %c0_3 = arith.constant 0 : index
    %4 = vector.load %arg2[%c0_2, %c0_3] : memref<128x128xf32, #tpu.memory_space<vmem>>, vector<128x128xf32>
    %cst = arith.constant dense<0.000000e+00> : vector<128xf32>
    %5 = vector.multi_reduction <add>, %4, %cst [1] : vector<128x128xf32> to vector<128xf32>
    %6 = vector.shape_cast %5 : vector<128xf32> to vector<128x1xf32>
    %7 = arith.addf %3, %6 : vector<128x1xf32>
    %c0_4 = arith.constant 0 : index
    %c0_5 = arith.constant 0 : index
    %8 = vector.load %arg3[%c0_4, %c0_5] : memref<128x1xf32, #tpu.memory_space<vmem>>, vector<128x1xf32>
    tpu.vector_store %arg3[%c0_4, %c0_5], %7 {strides = array<i32>} : memref<128x1xf32, #tpu.memory_space<vmem>>, vector<128x1xf32>,
    %c1_i32 = arith.constant 1 : i32
    %9 = arith.cmpi eq, %arg1, %c1_i32 : i32
    %10 = arith.extui %9 : i1 to i32
    %c0_i32_6 = arith.constant 0 : i32
    %11 = arith.cmpi ne, %10, %c0_i32_6 : i32
    scf.if %11 {
      %c0_7 = arith.constant 0 : index
      %c0_8 = arith.constant 0 : index
      %12 = vector.load %arg3[%c0_7, %c0_8] : memref<128x1xf32, #tpu.memory_space<vmem>>, vector<128x1xf32>
      %cst_9 = arith.constant 1.000000e+00 : f32
      %13 = vector.broadcast %cst_9 : f32 to vector<128x1xf32>
      %14 = arith.maximumf %12, %13 : vector<128x1xf32>
      %15 = math.rsqrt %14 : vector<128x1xf32>
      %cst_10 = arith.constant 1.33491421 : f32
      %16 = vector.broadcast %cst_10 : f32 to vector<128x1xf32>
      %17 = arith.mulf %16, %15 : vector<128x1xf32>
      %c0_11 = arith.constant 0 : index
      %c0_12 = arith.constant 0 : index
      %18 = vector.load %arg3[%c0_11, %c0_12] : memref<128x1xf32, #tpu.memory_space<vmem>>, vector<128x1xf32>
      tpu.vector_store %arg3[%c0_11, %c0_12], %17 {strides = array<i32>} : memref<128x1xf32, #tpu.memory_space<vmem>>, vector<128x1xf32>,
    } else {
    }
    return
  }
  func.func @transform_0(%arg0: i32, %arg1: i32) -> (i32, i32) {
    %c0_i32 = arith.constant 0 : i32
    return %arg0, %arg1 : i32, i32
  }
  func.func @transform_1(%arg0: i32, %arg1: i32) -> (i32, i32) {
    %c0_i32 = arith.constant 0 : i32
    %c0_i32_0 = arith.constant 0 : i32
    return %arg0, %c0_i32 : i32, i32
  }
}

</mosaic_0001>

<llo_original>
// kernel: tpu_custom_call.1
$region0: #{tpu_custom_call.1}
  #allocation0 [shape = 'u32[]', space=smem, size = 0x4, offset = 0x4, fixed_abs, tag = 'smem constant byte address 0x4 - core index']
  #allocation1 [shape = 'u32[144,128]{1,0:T(1,128)}', space=vmem, size = 0x12000, scoped, tag = 'internal scratch']
  %s0 = inlined_call_operand.hbm [shape: f32[256,256], index: 0, kind: input, shape index: {}]
  %s1 = inlined_call_operand.vmem [shape: f32[256,1], index: 1, kind: output, shape index: {}]
  %s2 = sld [smem:[#allocation0]]
  $region49: #{tpu_custom_call.1} parent=0
    _
  %s4 = ssub.s32 1, %s2
  %s5 = scalar_select 0, %s4, %s2
  $region1: #{tpu_custom_call.1} parent=0
    #allocation2 [shape = 'u8[131072]{0}', space=vmem, size = 0x20000, scoped, tag = 'input window, operand 0']
    #allocation3 [shape = 's32[2]{0}', space=sflag, size = 0x8, scoped, tag = 'scoped memory for tpu_custom_call.1']
    %6 = vsyncpa [#allocation3], 0
    %s7 = scalar_lea.sflag [#allocation3], 1
    %8 = vsyncpa %s7, 0
    loop: start=0, step=1, limit=6
    $region2: #{tpu_custom_call.1} parent=1 // loop_pre_header
      _
    $region3: #{tpu_custom_call.1} parent=1 // loop_header
      %s10 = sphi 0, %s14
      %p11 = scmp.ge.s32.totalorder %s10, 6
      %s17 = sphi 0, %s29
      %s18 = sphi 0, %s25
      %s19 = sphi 0, %s17
      %s20 = sphi 0, %s18
      %s21 = sphi 0, %s19
      %s22 = sphi 0, %s20
      %s34 = sphi 0, %s36
      %s37 = sphi 0, %s34
      %s38 = sphi 0, %s37
      %s54 = sphi 0, %s38
      %s60 = sphi 0, %s62
      %s63 = sphi 0, %s60
      %s64 = sphi 0, %s63
      %s80 = sphi 0, %s64
    $region4: #{tpu_custom_call.1} parent=1 // loop_header_branch
      %13 = sbr.rel (%p11) target = $region8
    $region5: #{tpu_custom_call.1} parent=1 // loop_body
      %s15 = ssub.s32 %s10, 1
      %s16 = ssub.s32 %s10, 2
      %s23 = sadd.s32 1, %s18
      %p24 = scmp.ge.s32.totalorder %s23, 2
      %s25 = scalar_select %p24, 0, %s23
      %s26 = sadd.s32 1, %s17
      %s27 = scalar_select %p24, %s26, %s17
      %p28 = scmp.ge.s32.totalorder %s27, 2
      %s29 = scalar_select %p28, 0, %s27
      %s30 = ssub.s32 %s17, %s29
      %s31 = ssub.s32 %s18, %s25
      %s32 = sor.u32 %s30, %s31
      %p33 = scmp.eq.s32.totalorder %s32, 0
      %s35 = sadd.s32 %s34, 1
      %s36 = scalar_select %p33, %s34, %s35
      %p39 = pneg %p33
      %p40 = scmp.eq.s32.totalorder %s10, 3
      %p41 = por %p39, %p40
      %p42 = scmp.ne.s32.totalorder %s34, %s37
      %p43 = scmp.eq.s32.totalorder %s10, 0
      %p44 = por %p42, %p43
      %p45 = scmp.ne.s32.totalorder %s34, %s37
      %p46 = scmp.eq.s32.totalorder %s15, 3
      %p47 = por %p45, %p46
      %p48 = scmp.ne.s32.totalorder %s37, %s38
      %p49 = scmp.eq.s32.totalorder %s15, 0
      %p50 = por %p48, %p49
      %p51 = scmp.ne.s32.totalorder %s37, %s38
      %p52 = scmp.eq.s32.totalorder %s16, 3
      %p53 = por %p51, %p52
      %p55 = scmp.ne.s32.totalorder %s38, %s54
      %p56 = scmp.eq.s32.totalorder %s16, 0
      %p57 = por %p55, %p56
      %s58 = ssub.s32 %s17, %s29
      %p59 = scmp.eq.s32.totalorder %s58, 0
      %s61 = sadd.s32 %s60, 1
      %s62 = scalar_select %p59, %s60, %s61
      %p65 = pneg %p59
      %p66 = scmp.eq.s32.totalorder %s10, 3
      %p67 = por %p65, %p66
      %p68 = scmp.ne.s32.totalorder %s60, %s63
      %p69 = scmp.eq.s32.totalorder %s10, 0
      %p70 = por %p68, %p69
      %p71 = scmp.ne.s32.totalorder %s60, %s63
      %p72 = scmp.eq.s32.totalorder %s15, 3
      %p73 = por %p71, %p72
      %p74 = scmp.ne.s32.totalorder %s63, %s64
      %p75 = scmp.eq.s32.totalorder %s15, 0
      %p76 = por %p74, %p75
      %p77 = scmp.ne.s32.totalorder %s63, %s64
      %p78 = scmp.eq.s32.totalorder %s16, 3
      %p79 = por %p77, %p78
      %p81 = scmp.ne.s32.totalorder %s64, %s80
      %p82 = scmp.eq.s32.totalorder %s16, 0
      %p83 = por %p81, %p82
      %p84 = scmp.le.s32.totalorder 1, %s10
      %p85 = scmp.lt.s32.totalorder %s10, 5
      %p86 = pnand %p84, %p85
      %p87 = pneg %p86
      // Predicated region
      $region9: #{tpu_custom_call.1} parent=5 // pred_check
        _
      $region10: #{tpu_custom_call.1} parent=5 // pred_check_branch
        %89 = sbr.rel (%p86) target = $region12
      $region11: #{tpu_custom_call.1} parent=5 // pred_region
        %s90 = ssub.s32 %s10, 1
      $region12: #{tpu_custom_call.1} parent=5 // pred_fallthru
        _
      %p91 = scmp.lt.s32.totalorder %s10, 4
      // Predicated region
      $region13: #{tpu_custom_call.1} parent=5 // pred_check
        %p92 = pneg %p91
      $region14: #{tpu_custom_call.1} parent=5 // pred_check_branch
        %94 = sbr.rel (%p92) target = $region16
      $region15: #{tpu_custom_call.1} parent=5 // pred_region
        // Predicated region
        $region17: #{tpu_custom_call.1} parent=15 // pred_check
          %p95 = pneg %p44
        $region18: #{tpu_custom_call.1} parent=15 // pred_check_branch
          %97 = sbr.rel (%p95) target = $region20
        $region19: #{tpu_custom_call.1} parent=15 // pred_region
          %s98 = sand.u32 %s34, 1
          %s99 = scalar_lea.sflag [#allocation3], %s98
          %s100 = sand.u32 %s34, 1
          %s101 = smul.addr %s100, 128
          %s102 = scalar_lea.vmem [#allocation2], %s101
          %s103 = smul.u32 16, %s17
          %s105 = ssub.s32 2048, 2048
          %106 = vsyncadd %s99, %s105
          %s107 = smul.addr %s103, 2
          %s108 = sadd.s32 %s18, %s107
          %s109 = smul.addr %s108, 128
          %s110 = scalar_lea.hbm %s0, %s109
          %s111 = sshll.u32 %s102, 4
          %s112 = int_to_ptr.vmem [resolvable:$true] %s111
          %117 = dma.hbm_to_vmem [thread:$0]  %s110, 2048, %s112, %s99, 256, 128, 8
        $region20: #{tpu_custom_call.1} parent=15 // pred_fallthru
          _
      $region16: #{tpu_custom_call.1} parent=5 // pred_fallthru
        _
      %p118 = scmp.le.s32.totalorder 1, %s10
      %p119 = scmp.lt.s32.totalorder %s10, 5
      %p120 = pnand %p118, %p119
      %p121 = pneg %p120
      // Predicated region
      $region21: #{tpu_custom_call.1} parent=5 // pred_check
        _
      $region22: #{tpu_custom_call.1} parent=5 // pred_check_branch
        %123 = sbr.rel (%p120) target = $region24
      $region23: #{tpu_custom_call.1} parent=5 // pred_region
        %s124 = ssub.s32 %s10, 1
        %s125 = sand.u32 %s37, 1
        %s126 = scalar_lea.sflag [#allocation3], %s125
        %s127 = sand.u32 %s37, 1
        %s128 = smul.addr %s127, 128
        %s129 = scalar_lea.vmem [#allocation2], %s128
        // Predicated region
        $region25: #{tpu_custom_call.1} parent=23 // pred_check
          %p130 = pneg %p50
        $region26: #{tpu_custom_call.1} parent=23 // pred_check_branch
          %132 = sbr.rel (%p130) target = $region28
        $region27: #{tpu_custom_call.1} parent=23 // pred_region
          %133 = dma.done %s126, 2048
        $region28: #{tpu_custom_call.1} parent=23 // pred_fallthru
          _
        %s134 = sand.u32 %s37, 1
        %s135 = scalar_lea.sflag [#allocation3], %s134
        %s136 = sand.u32 %s37, 1
        %s137 = smul.addr %s136, 128
        %s138 = scalar_lea.vmem [#allocation2], %s137
        %p139 = pneg %p50
        %p140 = pneg %p47
        %p141 = pneg %p76
        %p142 = pneg %p73
        %s143 = smul.u32 16, %s19
        %p144 = scmp.lt.s32.totalorder %s143, 31
        %s145 = scalar_select %p144, %s143, 31
        %s146 = smul.addr %s145, 8
        %s147 = scalar_lea.vmem %s1, %s146
        %s148 = smul.u32 16, %s19
        %s149 = smul.u32 16, %s19
        %p150 = scmp.lt.s32.totalorder %s149, 31
        %s151 = scalar_select %p150, %s149, 31
        %s152 = smul.addr %s151, 8
        %s153 = scalar_lea.vmem %s1, %s152
        %s154 = smul.u32 16, %s19
        %p155 = scmp.eq.s32.totalorder %s20, 0
        // Predicated region
        $region29: #{tpu_custom_call.1} parent=23 // pred_check
          %p156 = pneg %p155
        $region30: #{tpu_custom_call.1} parent=23 // pred_check_branch
          %158 = sbr.rel (%p156) target = $region32
        $region31: #{tpu_custom_call.1} parent=23 // pred_region
          %vm159 = vcmask 7168
          %160 = vst.msk [vmem:[%s153] sm:$0xff] %vm159, 0.0
          %161 = vst.msk [vmem:[%s153 + $0x8] sm:$0xff] %vm159, 0.0
          %162 = vst.msk [vmem:[%s153 + $0x10] sm:$0xff] %vm159, 0.0
          %163 = vst.msk [vmem:[%s153 + $0x18] sm:$0xff] %vm159, 0.0
          %164 = vst.msk [vmem:[%s153 + $0x20] sm:$0xff] %vm159, 0.0
          %165 = vst.msk [vmem:[%s153 + $0x28] sm:$0xff] %vm159, 0.0
          %166 = vst.msk [vmem:[%s153 + $0x30] sm:$0xff] %vm159, 0.0
          %167 = vst.msk [vmem:[%s153 + $0x38] sm:$0xff] %vm159, 0.0
          %168 = vst.msk [vmem:[%s153 + $0x40] sm:$0xff] %vm159, 0.0
          %169 = vst.msk [vmem:[%s153 + $0x48] sm:$0xff] %vm159, 0.0
          %170 = vst.msk [vmem:[%s153 + $0x50] sm:$0xff] %vm159, 0.0
          %171 = vst.msk [vmem:[%s153 + $0x58] sm:$0xff] %vm159, 0.0
          %172 = vst.msk [vmem:[%s153 + $0x60] sm:$0xff] %vm159, 0.0
          %173 = vst.msk [vmem:[%s153 + $0x68] sm:$0xff] %vm159, 0.0
          %174 = vst.msk [vmem:[%s153 + $0x70] sm:$0xff] %vm159, 0.0
          %175 = vst.msk [vmem:[%s153 + $0x78] sm:$0xff] %vm159, 0.0
        $region32: #{tpu_custom_call.1} parent=23 // pred_fallthru
          _
        %v176 = vld [vmem:[%s153] sm:$0xff]
        %v177 = vld [vmem:[%s153 + $0x8] sm:$0xff]
        %v178 = vld [vmem:[%s153 + $0x10] sm:$0xff]
        %v179 = vld [vmem:[%s153 + $0x18] sm:$0xff]
        %v180 = vld [vmem:[%s153 + $0x20] sm:$0xff]
        %v181 = vld [vmem:[%s153 + $0x28] sm:$0xff]
        %v182 = vld [vmem:[%s153 + $0x30] sm:$0xff]
        %v183 = vld [vmem:[%s153 + $0x38] sm:$0xff]
        %v184 = vld [vmem:[%s153 + $0x40] sm:$0xff]
        %v185 = vld [vmem:[%s153 + $0x48] sm:$0xff]
        %v186 = vld [vmem:[%s153 + $0x50] sm:$0xff]
        %v187 = vld [vmem:[%s153 + $0x58] sm:$0xff]
        %v188 = vld [vmem:[%s153 + $0x60] sm:$0xff]
        %v189 = vld [vmem:[%s153 + $0x68] sm:$0xff]
        %v190 = vld [vmem:[%s153 + $0x70] sm:$0xff]
        %v191 = vld [vmem:[%s153 + $0x78] sm:$0xff]
        %v192 = vld [vmem:[%s129] sm:$0xff]
        %v193 = vld [vmem:[%s129 + $0x8] sm:$0xff]
        %v194 = vld [vmem:[%s129 + $0x10] sm:$0xff]
        %v195 = vld [vmem:[%s129 + $0x18] sm:$0xff]
        %v196 = vld [vmem:[%s129 + $0x20] sm:$0xff]
        %v197 = vld [vmem:[%s129 + $0x28] sm:$0xff]
        %v198 = vld [vmem:[%s129 + $0x30] sm:$0xff]
        %v199 = vld [vmem:[%s129 + $0x38] sm:$0xff]
        %v200 = vld [vmem:[%s129 + $0x40] sm:$0xff]
        %v201 = vld [vmem:[%s129 + $0x48] sm:$0xff]
        %v202 = vld [vmem:[%s129 + $0x50] sm:$0xff]
        %v203 = vld [vmem:[%s129 + $0x58] sm:$0xff]
        %v204 = vld [vmem:[%s129 + $0x60] sm:$0xff]
        %v205 = vld [vmem:[%s129 + $0x68] sm:$0xff]
        %v206 = vld [vmem:[%s129 + $0x70] sm:$0xff]
        %v207 = vld [vmem:[%s129 + $0x78] sm:$0xff]
        %208 = vadd.xlane.f32.xlu0 %v192
        %v209 = vpop.xlane.xlu0 %208
        %210 = vadd.xlane.f32.xlu0 %v193
        %v211 = vpop.xlane.xlu0 %210
        %212 = vadd.xlane.f32.xlu0 %v194
        %v213 = vpop.xlane.xlu0 %212
        %214 = vadd.xlane.f32.xlu0 %v195
        %v215 = vpop.xlane.xlu0 %214
        %216 = vadd.xlane.f32.xlu0 %v196
        %v217 = vpop.xlane.xlu0 %216
        %218 = vadd.xlane.f32.xlu0 %v197
        %v219 = vpop.xlane.xlu0 %218
        %220 = vadd.xlane.f32.xlu0 %v198
        %v221 = vpop.xlane.xlu0 %220
        %222 = vadd.xlane.f32.xlu0 %v199
        %v223 = vpop.xlane.xlu0 %222
        %224 = vadd.xlane.f32.xlu0 %v200
        %v225 = vpop.xlane.xlu0 %224
        %226 = vadd.xlane.f32.xlu0 %v201
        %v227 = vpop.xlane.xlu0 %226
        %228 = vadd.xlane.f32.xlu0 %v202
        %v229 = vpop.xlane.xlu0 %228
        %230 = vadd.xlane.f32.xlu0 %v203
        %v231 = vpop.xlane.xlu0 %230
        %232 = vadd.xlane.f32.xlu0 %v204
        %v233 = vpop.xlane.xlu0 %232
        %234 = vadd.xlane.f32.xlu0 %v205
        %v235 = vpop.xlane.xlu0 %234
        %236 = vadd.xlane.f32.xlu0 %v206
        %v237 = vpop.xlane.xlu0 %236
        %238 = vadd.xlane.f32.xlu0 %v207
        %v239 = vpop.xlane.xlu0 %238
        %v240 = vadd.f32 %v176, %v209
        %v241 = vadd.f32 %v177, %v211
        %v242 = vadd.f32 %v178, %v213
        %v243 = vadd.f32 %v179, %v215
        %v244 = vadd.f32 %v180, %v217
        %v245 = vadd.f32 %v181, %v219
        %v246 = vadd.f32 %v182, %v221
        %v247 = vadd.f32 %v183, %v223
        %v248 = vadd.f32 %v184, %v225
        %v249 = vadd.f32 %v185, %v227
        %v250 = vadd.f32 %v186, %v229
        %v251 = vadd.f32 %v187, %v231
        %v252 = vadd.f32 %v188, %v233
        %v253 = vadd.f32 %v189, %v235
        %v254 = vadd.f32 %v190, %v237
        %v255 = vadd.f32 %v191, %v239
        %vm256 = vcmask 7168
        %257 = vst.msk [vmem:[%s153] sm:$0xff] %vm256, %v240
        %258 = vst.msk [vmem:[%s153 + $0x8] sm:$0xff] %vm256, %v241
        %259 = vst.msk [vmem:[%s153 + $0x10] sm:$0xff] %vm256, %v242
        %260 = vst.msk [vmem:[%s153 + $0x18] sm:$0xff] %vm256, %v243
        %261 = vst.msk [vmem:[%s153 + $0x20] sm:$0xff] %vm256, %v244
        %262 = vst.msk [vmem:[%s153 + $0x28] sm:$0xff] %vm256, %v245
        %263 = vst.msk [vmem:[%s153 + $0x30] sm:$0xff] %vm256, %v246
        %264 = vst.msk [vmem:[%s153 + $0x38] sm:$0xff] %vm256, %v247
        %265 = vst.msk [vmem:[%s153 + $0x40] sm:$0xff] %vm256, %v248
        %266 = vst.msk [vmem:[%s153 + $0x48] sm:$0xff] %vm256, %v249
        %267 = vst.msk [vmem:[%s153 + $0x50] sm:$0xff] %vm256, %v250
        %268 = vst.msk [vmem:[%s153 + $0x58] sm:$0xff] %vm256, %v251
        %269 = vst.msk [vmem:[%s153 + $0x60] sm:$0xff] %vm256, %v252
        %270 = vst.msk [vmem:[%s153 + $0x68] sm:$0xff] %vm256, %v253
        %271 = vst.msk [vmem:[%s153 + $0x70] sm:$0xff] %vm256, %v254
        %272 = vst.msk [vmem:[%s153 + $0x78] sm:$0xff] %vm256, %v255
        %p273 = scmp.eq.s32.totalorder %s20, 1
        // Predicated region
        $region33: #{tpu_custom_call.1} parent=23 // pred_check
          %p274 = pneg %p273
        $region34: #{tpu_custom_call.1} parent=23 // pred_check_branch
          %276 = sbr.rel (%p274) target = $region36
        $region35: #{tpu_custom_call.1} parent=23 // pred_region
          %v277 = vld [vmem:[%s153] sm:$0xff]
          %v278 = vld [vmem:[%s153 + $0x8] sm:$0xff]
          %v279 = vld [vmem:[%s153 + $0x10] sm:$0xff]
          %v280 = vld [vmem:[%s153 + $0x18] sm:$0xff]
          %v281 = vld [vmem:[%s153 + $0x20] sm:$0xff]
          %v282 = vld [vmem:[%s153 + $0x28] sm:$0xff]
          %v283 = vld [vmem:[%s153 + $0x30] sm:$0xff]
          %v284 = vld [vmem:[%s153 + $0x38] sm:$0xff]
          %v285 = vld [vmem:[%s153 + $0x40] sm:$0xff]
          %v286 = vld [vmem:[%s153 + $0x48] sm:$0xff]
          %v287 = vld [vmem:[%s153 + $0x50] sm:$0xff]
          %v288 = vld [vmem:[%s153 + $0x58] sm:$0xff]
          %v289 = vld [vmem:[%s153 + $0x60] sm:$0xff]
          %v290 = vld [vmem:[%s153 + $0x68] sm:$0xff]
          %v291 = vld [vmem:[%s153 + $0x70] sm:$0xff]
          %v292 = vld [vmem:[%s153 + $0x78] sm:$0xff]
          %v293 = vmax.f32 %v277, 1.0
          %v294 = vmax.f32 %v278, 1.0
          %v295 = vmax.f32 %v279, 1.0
          %v296 = vmax.f32 %v280, 1.0
          %v297 = vmax.f32 %v281, 1.0
          %v298 = vmax.f32 %v282, 1.0
          %v299 = vmax.f32 %v283, 1.0
          %v300 = vmax.f32 %v284, 1.0
          %v301 = vmax.f32 %v285, 1.0
          %v302 = vmax.f32 %v286, 1.0
          %v303 = vmax.f32 %v287, 1.0
          %v304 = vmax.f32 %v288, 1.0
          %v305 = vmax.f32 %v289, 1.0
          %v306 = vmax.f32 %v290, 1.0
          %v307 = vmax.f32 %v291, 1.0
          %v308 = vmax.f32 %v292, 1.0
          %v309 = vrsqrt.pop %v293
          %v310 = vrsqrt.pop %v294
          %v311 = vrsqrt.pop %v295
          %v312 = vrsqrt.pop %v296
          %v313 = vrsqrt.pop %v297
          %v314 = vrsqrt.pop %v298
          %v315 = vrsqrt.pop %v299
          %v316 = vrsqrt.pop %v300
          %v317 = vrsqrt.pop %v301
          %v318 = vrsqrt.pop %v302
          %v319 = vrsqrt.pop %v303
          %v320 = vrsqrt.pop %v304
          %v321 = vrsqrt.pop %v305
          %v322 = vrsqrt.pop %v306
          %v323 = vrsqrt.pop %v307
          %v324 = vrsqrt.pop %v308
          %v325 = vmul.f32 %v309, 1.3349142
          %v326 = vmul.f32 %v310, 1.3349142
          %v327 = vmul.f32 %v311, 1.3349142
          %v328 = vmul.f32 %v312, 1.3349142
          %v329 = vmul.f32 %v313, 1.3349142
          %v330 = vmul.f32 %v314, 1.3349142
          %v331 = vmul.f32 %v315, 1.3349142
          %v332 = vmul.f32 %v316, 1.3349142
          %v333 = vmul.f32 %v317, 1.3349142
          %v334 = vmul.f32 %v318, 1.3349142
          %v335 = vmul.f32 %v319, 1.3349142
          %v336 = vmul.f32 %v320, 1.3349142
          %v337 = vmul.f32 %v321, 1.3349142
          %v338 = vmul.f32 %v322, 1.3349142
          %v339 = vmul.f32 %v323, 1.3349142
          %v340 = vmul.f32 %v324, 1.3349142
          %341 = vst.msk [vmem:[%s153] sm:$0xff] %vm256, %v325
          %342 = vst.msk [vmem:[%s153 + $0x8] sm:$0xff] %vm256, %v326
          %343 = vst.msk [vmem:[%s153 + $0x10] sm:$0xff] %vm256, %v327
          %344 = vst.msk [vmem:[%s153 + $0x18] sm:$0xff] %vm256, %v328
          %345 = vst.msk [vmem:[%s153 + $0x20] sm:$0xff] %vm256, %v329
          %346 = vst.msk [vmem:[%s153 + $0x28] sm:$0xff] %vm256, %v330
          %347 = vst.msk [vmem:[%s153 + $0x30] sm:$0xff] %vm256, %v331
          %348 = vst.msk [vmem:[%s153 + $0x38] sm:$0xff] %vm256, %v332
          %349 = vst.msk [vmem:[%s153 + $0x40] sm:$0xff] %vm256, %v333
          %350 = vst.msk [vmem:[%s153 + $0x48] sm:$0xff] %vm256, %v334
          %351 = vst.msk [vmem:[%s153 + $0x50] sm:$0xff] %vm256, %v335
          %352 = vst.msk [vmem:[%s153 + $0x58] sm:$0xff] %vm256, %v336
          %353 = vst.msk [vmem:[%s153 + $0x60] sm:$0xff] %vm256, %v337
          %354 = vst.msk [vmem:[%s153 + $0x68] sm:$0xff] %vm256, %v338
          %355 = vst.msk [vmem:[%s153 + $0x70] sm:$0xff] %vm256, %v339
          %356 = vst.msk [vmem:[%s153 + $0x78] sm:$0xff] %vm256, %v340
        $region36: #{tpu_custom_call.1} parent=23 // pred_fallthru
          _
        %s357 = smul.u32 16, %s19
        %p358 = scmp.lt.s32.totalorder %s357, 31
        %s359 = scalar_select %p358, %s357, 31
        %s360 = smul.addr %s359, 8
        %s361 = scalar_lea.vmem %s1, %s360
        // Predicated region
        $region37: #{tpu_custom_call.1} parent=23 // pred_check
          %p362 = pneg %p73
        $region38: #{tpu_custom_call.1} parent=23 // pred_check_branch
          %364 = sbr.rel (%p362) target = $region40
        $region39: #{tpu_custom_call.1} parent=23 // pred_region
          %s365 = smul.u32 16, %s19
        $region40: #{tpu_custom_call.1} parent=23 // pred_fallthru
          _
      $region24: #{tpu_custom_call.1} parent=5 // pred_fallthru
        _
      %p366 = scmp.le.s32.totalorder 2, %s10
      // Predicated region
      $region41: #{tpu_custom_call.1} parent=5 // pred_check
        %p367 = pneg %p366
      $region42: #{tpu_custom_call.1} parent=5 // pred_check_branch
        %369 = sbr.rel (%p367) target = $region44
      $region43: #{tpu_custom_call.1} parent=5 // pred_region
        %s370 = ssub.s32 %s10, 2
        // Predicated region
        $region45: #{tpu_custom_call.1} parent=43 // pred_check
          %p371 = pneg %p79
        $region46: #{tpu_custom_call.1} parent=43 // pred_check_branch
          %373 = sbr.rel (%p371) target = $region48
        $region47: #{tpu_custom_call.1} parent=43 // pred_region
          %s374 = smul.u32 16, %s21
          %p375 = scmp.lt.s32.totalorder %s374, 31
          %s376 = scalar_select %p375, %s374, 31
          %s377 = smul.addr %s376, 8
          %s378 = scalar_lea.vmem %s1, %s377
        $region48: #{tpu_custom_call.1} parent=43 // pred_fallthru
          _
      $region44: #{tpu_custom_call.1} parent=5 // pred_fallthru
        _
    $region6: #{tpu_custom_call.1} parent=1 // loop_footer
      %s14 = sadd.s32 1, %s10
    $region7: #{tpu_custom_call.1} parent=1 // loop_footer_branch
      %9 = sbr.rel target = $region3
    $region8: #{tpu_custom_call.1} parent=1 // loop_exit
      _
    %379 = vsyncpa [#allocation3], 1
    %s380 = scalar_lea.sflag [#allocation3], 1
    %381 = vsyncpa %s380, 1

</llo_original>
